<compile_context>
chip_gen: v7x
topology: tpu7x:2x2x1
jax: 0.10.0
libtpu: 0.0.40
codegen_flags: <defaults>
</compile_context>

<pallas_src>
import jax
import jax.numpy as jnp
from jax.experimental import pallas as pl

P_DROP = 0.5  # dropout probability


def _dropout2_kernel(x_ref, bits_ref, o_ref):
    """Two independent p=0.5 dropout draws of x, written as one stacked output.

    x_ref:    (1, N) f32
    bits_ref: (2, N) uint32  (independent random bits per draw)
    o_ref:    (2, N) f32     (row 0 -> x3, row 1 -> x4)
    """
    x = x_ref[...]
    bits = bits_ref[...]
    scale = jnp.float32(1.0 / (1.0 - P_DROP))
    thresh = jnp.uint32(int(P_DROP * (2 ** 32)))        # drop iff bits < thresh
    keep = bits >= thresh                               # (2, N) bool
    scaled = jnp.broadcast_to(x * scale, keep.shape)    # (2, N)
    o_ref[...] = jnp.where(keep, scaled, jnp.zeros_like(scaled)).astype(o_ref.dtype)


def _model_forward(x1, x2, key):
    # TODO(synk): x2 is ignored — torch.nn.functional.drop has no real
    # semantics; interpreted as dropout(x1, p=0.5, training=True).
    del x2
    orig_shape = x1.shape
    n = x1.size
    x_flat = x1.reshape(1, n).astype(jnp.float32)

    # One RNG draw, disjoint bits for the two independent dropout masks.
    bits = jax.random.bits(key, (2, n), dtype=jnp.uint32)

    out = pl.pallas_call(
        _dropout2_kernel,
        out_shape=jax.ShapeDtypeStruct((2, n), x_flat.dtype),
    )(x_flat, bits)

    x3 = out[0].reshape(orig_shape).astype(x1.dtype)
    x4 = out[1].reshape(orig_shape).astype(x1.dtype)
    return x3, x4


model_forward = jax.jit(_model_forward)


if __name__ == "__main__":
    key = jax.random.PRNGKey(0)
    k1, k2, kdrop = jax.random.split(key, 3)
    x1 = jax.random.normal(k1, (1, 2, 2), dtype=jnp.float32)
    x2 = jax.random.normal(k2, (1, 2, 2), dtype=jnp.float32)

    x3, x4 = model_forward(x1, x2, kdrop)
    jax.block_until_ready((x3, x4))

    # Sanity: every output element is either 0 or x1 / (1 - p).
    scale = 1.0 / (1.0 - P_DROP)
    for out in (x3, x4):
        assert out.shape == x1.shape
        ok = jnp.all(jnp.isclose(out, 0.0) | jnp.isclose(out, x1 * scale))
        assert bool(ok), "dropout output not in {0, x/(1-p)}"

    print("KERNEL_OK")
</pallas_src>

<mosaic_0001>
module attributes {stable_mosaic.version = 11 : i64} {
  func.func @_dropout2_kernel(%arg0: memref<1x4xf32, #tpu.memory_space<vmem>>, %arg1: memref<2x4xi32, #tpu.memory_space<vmem>>, %arg2: memref<2x4xf32, #tpu.memory_space<vmem>>) attributes {dimension_semantics = [], scalar_prefetch = 0 : i64, scratch_operands = 0 : i64, tpu.core_type = #tpu.core_type<tc>} {
    %c0 = arith.constant 0 : index
    %c0_0 = arith.constant 0 : index
    %0 = vector.load %arg0[%c0, %c0_0] : memref<1x4xf32, #tpu.memory_space<vmem>>, vector<1x4xf32>
    %c0_1 = arith.constant 0 : index
    %c0_2 = arith.constant 0 : index
    %1 = vector.load %arg1[%c0_1, %c0_2] : memref<2x4xi32, #tpu.memory_space<vmem>>, vector<2x4xi32>
    %c-2147483648_i32 = arith.constant -2147483648 : i32
    %2 = vector.broadcast %c-2147483648_i32 : i32 to vector<2x4xi32>
    %3 = arith.cmpi uge, %1, %2 : vector<2x4xi32>
    %cst = arith.constant 2.000000e+00 : f32
    %4 = vector.broadcast %cst : f32 to vector<1x4xf32>
    %5 = arith.mulf %0, %4 : vector<1x4xf32>
    %6 = vector.shape_cast %5 : vector<1x4xf32> to vector<1x4xf32>
    %7 = vector.broadcast %6 : vector<1x4xf32> to vector<2x4xf32>
    %cst_3 = arith.constant 0.000000e+00 : f32
    %8 = vector.broadcast %cst_3 : f32 to vector<2x4xf32>
    %9 = arith.select %3, %7, %8 : vector<2x4xi1>, vector<2x4xf32>
    %c0_4 = arith.constant 0 : index
    %c0_5 = arith.constant 0 : index
    %10 = vector.load %arg2[%c0_4, %c0_5] : memref<2x4xf32, #tpu.memory_space<vmem>>, vector<2x4xf32>
    tpu.vector_store %arg2[%c0_4, %c0_5], %9 {strides = array<i32>} : memref<2x4xf32, #tpu.memory_space<vmem>>, vector<2x4xf32>,
    return
  }
}

</mosaic_0001>

<llo_original>
// kernel: squeeze.6
$region0: #{squeeze.6}
  %s0 = inlined_call_operand.vmem [shape: f32[4], index: 0, kind: input, shape index: {}]
  %s1 = inlined_call_operand.hbm [shape: f32[1,2,2], index: 1, kind: output, shape index: {}]
  $region1: #{squeeze.6} parent=0
    #allocation0 [shape = 'u8[1024]{0}', space=vmem, size = 0x400, scoped, tag = 'operand span for operand 1']
    #allocation1 [shape = 's32[1]{0}', space=sflag, size = 0x4, scoped, tag = 'scoped memory for squeeze.6']
    #allocation2 [shape = 'u8[4096]{0}', space=vmem, size = 0x1000, scoped, tag = 'scoped mem for output reshape']
    #allocation3 [shape = 'u8[4096]{0}', space=vmem, size = 0x1000, scoped, tag = 'scoped mem for input reshape']
    %2 = vsyncpa [#allocation1], 0
    %s4 = sshllo.u32 0, 1
    %v5 = vld [vmem:[%s0] sm:%s4]
    %6 = vst [vmem:[#allocation3] sm:%s4] %v5
    %v7 = vld [vmem:[#allocation3] sm:$0x1]
    %vm8 = vcmask 15360
    %9 = vst.msk [vmem:[#allocation2] sm:$0x1] %vm8, %v7
    %v10 = vld [vmem:[#allocation3] sm:$0x1]
    %11 = vrot.lane.b32.xlu0 %v10, 126
    %v12 = vpop.permute.xlu0 %11
    %vm13 = vcmask 15360
    %s14 = scalar_lea.vmem [#allocation2], 1
    %15 = vst.msk [vmem:[%s14] sm:$0x1] %vm13, %v12
    %s17 = sshllo.u32 0, 2
    %v19 = vld [vmem:[#allocation2] sm:%s17]
    %s20 = sshllo.u32 0, 2
    %21 = vst [vmem:[#allocation0] sm:%s20] %v19
    %s23 = ssub.s32 32, 32
    %24 = vsyncadd [#allocation1], %s23
    %s26 = sshll.u32 [#allocation0], 4
    %s27 = int_to_ptr.vmem [resolvable:$true] %s26
    %29 = dma.vmem_to_hbm [thread:$0]  %s27, 32, %s1, [#allocation1]
    %30 = dma.done [#allocation1], 32
    %31 = vsyncpa [#allocation1], 1

// kernel: _model_forward.1
$region0: #{_model_forward.1}
  #allocation0 [shape = 'u32[]', space=smem, size = 0x4, offset = 0x4, fixed_abs, tag = 'smem constant byte address 0x4 - core index']
  #allocation1 [shape = 'u32[144,128]{1,0:T(1,128)}', space=vmem, size = 0x12000, scoped, tag = 'internal scratch']
  %s0 = inlined_call_operand.vmem [shape: f32[1,4], index: 0, kind: input, shape index: {}]
  %s1 = inlined_call_operand.vmem [shape: u32[2,4], index: 1, kind: input, shape index: {}]
  %s2 = inlined_call_operand.vmem [shape: f32[2,4], index: 2, kind: output, shape index: {}]
  %s3 = sld [smem:[#allocation0]]
  $region18: #{_model_forward.1} parent=0
    _
  %s5 = ssub.s32 1, %s3
  %s6 = scalar_select 0, %s5, %s3
  // Predicated region
  $region2: #{_model_forward.1} parent=0 // pred_check
    _
  $region3: #{_model_forward.1} parent=0 // pred_check_branch
    %8 = sbr.rel (0) target = $region5
  $region4: #{_model_forward.1} parent=0 // pred_region
    _
  $region5: #{_model_forward.1} parent=0 // pred_fallthru
    _
  // Predicated region
  $region6: #{_model_forward.1} parent=0 // pred_check
    _
  $region7: #{_model_forward.1} parent=0 // pred_check_branch
    %10 = sbr.rel (0) target = $region9
  $region8: #{_model_forward.1} parent=0 // pred_region
    _
  $region9: #{_model_forward.1} parent=0 // pred_fallthru
    _
  %v11 = vld [vmem:[%s0] sm:$0x1]
  %v12 = vld [vmem:[%s1] sm:$0x3]
  %vm13 = vcmp.ge.u32.totalorder %v12, 2147483648
  %v14 = vmul.f32 %v11, 2.0
  %v16 = vlaneseq
  %v17 = vshrl.u32 %v16, 7
  %v18 = vsub.s32 0, %v17
  %v19 = vrot.slane %v14, %v18
  %v21 = vsel %vm13, %v19, 0.0
  %vm22 = vcmask 25600
  %23 = vst.msk [vmem:[%s2] sm:$0x3] %vm22, %v21
  // Predicated region
  $region10: #{_model_forward.1} parent=0 // pred_check
    _
  $region11: #{_model_forward.1} parent=0 // pred_check_branch
    %25 = sbr.rel (0) target = $region13
  $region12: #{_model_forward.1} parent=0 // pred_region
    _
  $region13: #{_model_forward.1} parent=0 // pred_fallthru
    _
  // Predicated region
  $region14: #{_model_forward.1} parent=0 // pred_check
    _
  $region15: #{_model_forward.1} parent=0 // pred_check_branch
    %27 = sbr.rel (0) target = $region17
  $region16: #{_model_forward.1} parent=0 // pred_region
    _
  $region17: #{_model_forward.1} parent=0 // pred_fallthru
    _

</llo_original>
